<compile_context>
chip_gen: v7x
topology: tpu7x:2x2x1
jax: 0.10.0
libtpu: 0.0.40
codegen_flags: <defaults>
</compile_context>

<pallas_src>
import jax
import jax.numpy as jnp
from jax.experimental import pallas as pl
from jax.experimental.pallas import tpu as pltpu

# Test-time module hyper-params (module defaults are 1280 / 768; kept small).
FEAT_DIM = 256     # nn.Linear(mid_dim, feat_dim)
MID_DIM = 128      # nn.Linear(17, mid_dim)
SIDI_DIM = 4       # side-chain dihedrals
BADI_DIM = 2       # backbone dihedrals  (4 + 2 + tau + theta = 8 angles)

N_ANGLE = 8        # number of angles fed to sin/cos
IN_DIM = 2 * N_ANGLE + 1   # 17 = sin(8) + cos(8) + plddt
K_PAD = 24         # 17 zero-padded to a multiple of 8 (sublane friendly)

TM_MAX = 512       # max token rows per grid step (memory-bound sweet spot)

_INV_SQRT2 = 0.7071067811865476


def _erf_approx(x):
    """Abramowitz & Stegun 7.1.26 erf, |err| <= ~1.5e-7 (f32-eps level).

    Uses only ops guaranteed to lower on Mosaic (exp, div, abs, where)."""
    a1 = 0.254829592
    a2 = -0.284496736
    a3 = 1.421413741
    a4 = -1.453152027
    a5 = 1.061405429
    p = 0.3275911
    ax = jnp.abs(x)
    t = 1.0 / (1.0 + p * ax)
    poly = ((((a5 * t + a4) * t + a3) * t + a2) * t + a1) * t
    y = 1.0 - poly * jnp.exp(-ax * ax)
    return jnp.where(x < 0, -y, y)


def _gelu_kernel(x):
    # PyTorch nn.GELU() default = exact erf formulation (approximated to
    # f32 machine precision; see _erf_approx).
    return 0.5 * x * (1.0 + _erf_approx(x * _INV_SQRT2))


def _gelu_exact(x):
    return 0.5 * x * (1.0 + jax.lax.erf(x * jnp.float32(_INV_SQRT2)))


def _choose_tm(m):
    """Largest tile <= TM_MAX, multiple of 8, keeping >=2 grid steps (v7x)."""
    tm = min(TM_MAX, max(8, (m + 1) // 2))
    return ((tm + 7) // 8) * 8


def fusion_kernel(x_ref, wc_ref, bc_ref, w3_ref, b3_ref, o_ref):
    x = x_ref[...]                                                # (TM, 24)

    # Stage 1: fused fc / fc2 as ONE GEMM of width 2*mid (W1|W2 concat).
    h = jnp.dot(x, wc_ref[...], preferred_element_type=jnp.float32)
    h = h + bc_ref[...]                                           # (TM, 2*mid)

    mid = h.shape[-1] // 2                                        # 128-lane aligned
    gated = _gelu_kernel(h[:, :mid]) * h[:, mid:]                 # (TM, mid)

    # Stage 2: fc3 -> lane-dense (TM, feat) output tile.
    o_ref[...] = (
        jnp.dot(gated, w3_ref[...], preferred_element_type=jnp.float32)
        + b3_ref[...]
    )


def fusion_plddt_pallas(sidi, badi, tau, theta, plddt, params):
    bs, n = sidi.shape[:2]
    m = bs * n

    w1, b1, w2, b2, w3, b3 = params          # weights stored (in, out) = W^T
    mid = w1.shape[1]
    feat = w3.shape[1]

    # ---- wrapper-side feature construction (tiny vs the (M, feat) output):
    # angle order matches the PyTorch module: [badi, sidi, tau, theta].
    angle = jnp.concatenate(
        [badi.astype(jnp.float32).reshape(m, BADI_DIM),
         sidi.astype(jnp.float32).reshape(m, SIDI_DIM),
         tau.astype(jnp.float32).reshape(m, 1),
         theta.astype(jnp.float32).reshape(m, 1)], axis=-1)       # (M, 8)
    p_f = plddt.astype(jnp.float32).reshape(m, 1) / 100.0
    x = jnp.concatenate(
        [jnp.sin(angle), jnp.cos(angle), p_f,
         jnp.zeros((m, K_PAD - IN_DIM), jnp.float32)], axis=-1)   # (M, 24)

    # ---- fused / zero-padded weights (cheap; could be cached per module).
    wc = jnp.concatenate([w1, w2], axis=1)                        # (17, 2*mid)
    wc = jnp.pad(wc, ((0, K_PAD - IN_DIM), (0, 0)))               # (24, 2*mid)
    bc = jnp.concatenate([b1, b2], axis=0).reshape(1, 2 * mid)
    b3r = b3.reshape(1, feat)

    # ---- grid: big token tiles, ragged M handled by padding (no assert).
    tm = _choose_tm(m)
    grid = pl.cdiv(m, tm)
    m_pad = grid * tm
    if m_pad != m:
        x = jnp.pad(x, ((0, m_pad - m), (0, 0)))

    cost = pl.CostEstimate(
        flops=2 * m_pad * (K_PAD * 2 * mid + mid * feat),
        transcendentals=m_pad * mid,
        bytes_accessed=4 * (m_pad * K_PAD + m_pad * feat
                            + K_PAD * 2 * mid + 2 * mid + mid * feat + feat),
    )

    out = pl.pallas_call(
        fusion_kernel,
        out_shape=jax.ShapeDtypeStruct((m_pad, feat), jnp.float32),
        grid_spec=pltpu.PrefetchScalarGridSpec(
            num_scalar_prefetch=0,
            grid=(grid,),
            in_specs=[
                pl.BlockSpec((tm, K_PAD), lambda i: (i, 0)),        # x tile
                pl.BlockSpec((K_PAD, 2 * mid), lambda i: (0, 0)),   # [W1|W2]
                pl.BlockSpec((1, 2 * mid), lambda i: (0, 0)),       # [b1|b2]
                pl.BlockSpec((mid, feat), lambda i: (0, 0)),        # W3
                pl.BlockSpec((1, feat), lambda i: (0, 0)),          # b3
            ],
            out_specs=pl.BlockSpec((tm, feat), lambda i: (i, 0)),
        ),
        compiler_params=pltpu.CompilerParams(
            dimension_semantics=("parallel",),
        ),
        cost_estimate=cost,
    )(x, wc, bc, w3, b3r)

    return out[:m].reshape(bs, n, feat)


def fusion_plddt_reference(sidi, badi, tau, theta, plddt, params):
    """Pure-JAX reference matching the PyTorch forward (exact-erf GELU)."""
    tau_f = tau.astype(jnp.float32)[..., None]
    theta_f = theta.astype(jnp.float32)[..., None]
    plddt_f = plddt.astype(jnp.float32)[..., None] / 100.0
    angle = jnp.concatenate(
        [badi.astype(jnp.float32), sidi.astype(jnp.float32), tau_f, theta_f],
        axis=-1)
    x = jnp.concatenate([jnp.sin(angle), jnp.cos(angle), plddt_f], axis=-1)
    w1, b1, w2, b2, w3, b3 = params
    x1 = _gelu_exact(x @ w1 + b1)
    x2 = x @ w2 + b2
    return (x1 * x2) @ w3 + b3


def init_params(key):
    # Deterministic synthetic init (PyTorch-Linear-style uniform).
    k1, k2, k3, k4, k5, k6 = jax.random.split(key, 6)
    lim1 = 1.0 / jnp.sqrt(IN_DIM)
    lim3 = 1.0 / jnp.sqrt(MID_DIM)
    w1 = jax.random.uniform(k1, (IN_DIM, MID_DIM), jnp.float32, -lim1, lim1)
    b1 = jax.random.uniform(k2, (MID_DIM,), jnp.float32, -lim1, lim1)
    w2 = jax.random.uniform(k3, (IN_DIM, MID_DIM), jnp.float32, -lim1, lim1)
    b2 = jax.random.uniform(k4, (MID_DIM,), jnp.float32, -lim1, lim1)
    w3 = jax.random.uniform(k5, (MID_DIM, FEAT_DIM), jnp.float32, -lim3, lim3)
    b3 = jax.random.uniform(k6, (FEAT_DIM,), jnp.float32, -lim3, lim3)
    return (w1, b1, w2, b2, w3, b3)


if __name__ == "__main__":
    key = jax.random.PRNGKey(0)
    kp, ks, kb, kt, kh, kl = jax.random.split(key, 6)

    bs, n = 2, 64   # M = 128 tokens -> tm=64, 2 grid steps
    sidi = jax.random.uniform(ks, (bs, n, SIDI_DIM), jnp.float32, -3.14, 3.14)
    badi = jax.random.uniform(kb, (bs, n, BADI_DIM), jnp.float32, -3.14, 3.14)
    tau = jax.random.uniform(kt, (bs, n), jnp.float32, -3.14, 3.14)
    theta = jax.random.uniform(kh, (bs, n), jnp.float32, -3.14, 3.14)
    plddt = jax.random.uniform(kl, (bs, n), jnp.float32, 0.0, 100.0)

    params = init_params(kp)

    out = fusion_plddt_pallas(sidi, badi, tau, theta, plddt, params)
    out = jax.block_until_ready(out)

    ref = fusion_plddt_reference(sidi, badi, tau, theta, plddt, params)
    assert out.shape == (bs, n, FEAT_DIM)
    assert jnp.allclose(out, ref, atol=2e-5, rtol=2e-5), "mismatch vs reference"

    print("KERNEL_OK")
</pallas_src>

<mosaic_0001>
module attributes {stable_mosaic.version = 11 : i64} {
  func.func @fusion_kernel(%arg0: i32, %arg1: memref<64x24xf32, #tpu.memory_space<vmem>>, %arg2: memref<24x256xf32, #tpu.memory_space<vmem>>, %arg3: memref<1x256xf32, #tpu.memory_space<vmem>>, %arg4: memref<128x256xf32, #tpu.memory_space<vmem>>, %arg5: memref<1x256xf32, #tpu.memory_space<vmem>>, %arg6: memref<64x256xf32, #tpu.memory_space<vmem>>) attributes {dimension_semantics = [#tpu.dimension_semantics<parallel>], iteration_bounds = array<i64: 2>, scalar_prefetch = 0 : i64, scratch_operands = 0 : i64, tpu.core_type = #tpu.core_type<tc>, window_params = [{transform_indices = @transform_0, window_bounds = array<i64: 64, 24>}, {pipeline_mode = #tpu.pipeline_mode<synchronous>, transform_indices = @transform_1, window_bounds = array<i64: 24, 256>}, {pipeline_mode = #tpu.pipeline_mode<synchronous>, transform_indices = @transform_2, window_bounds = array<i64: 1, 256>}, {pipeline_mode = #tpu.pipeline_mode<synchronous>, transform_indices = @transform_3, window_bounds = array<i64: 128, 256>}, {pipeline_mode = #tpu.pipeline_mode<synchronous>, transform_indices = @transform_4, window_bounds = array<i64: 1, 256>}, {transform_indices = @transform_5, window_bounds = array<i64: 64, 256>}]} {
    %c0 = arith.constant 0 : index
    %c0_0 = arith.constant 0 : index
    %0 = vector.load %arg1[%c0, %c0_0] : memref<64x24xf32, #tpu.memory_space<vmem>>, vector<64x24xf32>
    %c0_1 = arith.constant 0 : index
    %c0_2 = arith.constant 0 : index
    %1 = vector.load %arg2[%c0_1, %c0_2] : memref<24x256xf32, #tpu.memory_space<vmem>>, vector<24x256xf32>
    %cst = arith.constant dense<0.000000e+00> : vector<64x256xf32>
    %2 = tpu.matmul %0, %1, %cst {dimension_numbers = #tpu.dot_dimension_numbers<[1], [0], [0], [1], [0, 0, 1, 1], [], []>} : vector<64x24xf32>, vector<24x256xf32>, vector<64x256xf32> -> vector<64x256xf32>
    %c0_3 = arith.constant 0 : index
    %c0_4 = arith.constant 0 : index
    %3 = vector.load %arg3[%c0_3, %c0_4] : memref<1x256xf32, #tpu.memory_space<vmem>>, vector<1x256xf32>
    %4 = vector.broadcast %3 : vector<1x256xf32> to vector<64x256xf32>
    %5 = arith.addf %2, %4 : vector<64x256xf32>
    %6 = vector.extract_strided_slice %5 {offsets = [0, 0], sizes = [64, 128], strides = [1, 1]} : vector<64x256xf32> to vector<64x128xf32>
    %cst_5 = arith.constant 5.000000e-01 : f32
    %7 = vector.broadcast %cst_5 : f32 to vector<64x128xf32>
    %8 = arith.mulf %7, %6 : vector<64x128xf32>
    %cst_6 = arith.constant 0.707106769 : f32
    %9 = vector.broadcast %cst_6 : f32 to vector<64x128xf32>
    %10 = arith.mulf %6, %9 : vector<64x128xf32>
    %11 = math.absf %10 : vector<64x128xf32>
    %cst_7 = arith.constant 0.327591091 : f32
    %12 = vector.broadcast %cst_7 : f32 to vector<64x128xf32>
    %13 = arith.mulf %12, %11 : vector<64x128xf32>
    %cst_8 = arith.constant 1.000000e+00 : f32
    %14 = vector.broadcast %cst_8 : f32 to vector<64x128xf32>
    %15 = arith.addf %14, %13 : vector<64x128xf32>
    %cst_9 = arith.constant 1.000000e+00 : f32
    %16 = vector.broadcast %cst_9 : f32 to vector<64x128xf32>
    %17 = arith.divf %16, %15 : vector<64x128xf32>
    %cst_10 = arith.constant 1.06140542 : f32
    %18 = vector.broadcast %cst_10 : f32 to vector<64x128xf32>
    %19 = arith.mulf %18, %17 : vector<64x128xf32>
    %cst_11 = arith.constant -1.45315206 : f32
    %20 = vector.broadcast %cst_11 : f32 to vector<64x128xf32>
    %21 = arith.addf %19, %20 : vector<64x128xf32>
    %22 = arith.mulf %21, %17 : vector<64x128xf32>
    %cst_12 = arith.constant 1.42141378 : f32
    %23 = vector.broadcast %cst_12 : f32 to vector<64x128xf32>
    %24 = arith.addf %22, %23 : vector<64x128xf32>
    %25 = arith.mulf %24, %17 : vector<64x128xf32>
    %cst_13 = arith.constant -0.284496725 : f32
    %26 = vector.broadcast %cst_13 : f32 to vector<64x128xf32>
    %27 = arith.addf %25, %26 : vector<64x128xf32>
    %28 = arith.mulf %27, %17 : vector<64x128xf32>
    %cst_14 = arith.constant 0.254829586 : f32
    %29 = vector.broadcast %cst_14 : f32 to vector<64x128xf32>
    %30 = arith.addf %28, %29 : vector<64x128xf32>
    %31 = arith.mulf %30, %17 : vector<64x128xf32>
    %cst_15 = arith.constant 0.000000e+00 : f32
    %32 = vector.broadcast %cst_15 : f32 to vector<64x128xf32>
    %33 = arith.subf %32, %11 : vector<64x128xf32>
    %34 = arith.mulf %33, %11 : vector<64x128xf32>
    %35 = math.exp %34 : vector<64x128xf32>
    %36 = arith.mulf %31, %35 : vector<64x128xf32>
    %cst_16 = arith.constant 1.000000e+00 : f32
    %37 = vector.broadcast %cst_16 : f32 to vector<64x128xf32>
    %38 = arith.subf %37, %36 : vector<64x128xf32>
    %cst_17 = arith.constant 0.000000e+00 : f32
    %39 = vector.broadcast %cst_17 : f32 to vector<64x128xf32>
    %40 = arith.cmpf olt, %10, %39 : vector<64x128xf32>
    %cst_18 = arith.constant 0.000000e+00 : f32
    %41 = vector.broadcast %cst_18 : f32 to vector<64x128xf32>
    %42 = arith.subf %41, %38 : vector<64x128xf32>
    %43 = arith.select %40, %42, %38 : vector<64x128xi1>, vector<64x128xf32>
    %cst_19 = arith.constant 1.000000e+00 : f32
    %44 = vector.broadcast %cst_19 : f32 to vector<64x128xf32>
    %45 = arith.addf %44, %43 : vector<64x128xf32>
    %46 = arith.mulf %8, %45 : vector<64x128xf32>
    %47 = vector.extract_strided_slice %5 {offsets = [0, 128], sizes = [64, 128], strides = [1, 1]} : vector<64x256xf32> to vector<64x128xf32>
    %48 = arith.mulf %46, %47 : vector<64x128xf32>
    %c0_20 = arith.constant 0 : index
    %c0_21 = arith.constant 0 : index
    %49 = vector.load %arg4[%c0_20, %c0_21] : memref<128x256xf32, #tpu.memory_space<vmem>>, vector<128x256xf32>
    %cst_22 = arith.constant dense<0.000000e+00> : vector<64x256xf32>
    %50 = tpu.matmul %48, %49, %cst_22 {dimension_numbers = #tpu.dot_dimension_numbers<[1], [0], [0], [1], [0, 0, 1, 1], [], []>} : vector<64x128xf32>, vector<128x256xf32>, vector<64x256xf32> -> vector<64x256xf32>
    %c0_23 = arith.constant 0 : index
    %c0_24 = arith.constant 0 : index
    %51 = vector.load %arg5[%c0_23, %c0_24] : memref<1x256xf32, #tpu.memory_space<vmem>>, vector<1x256xf32>
    %52 = vector.broadcast %51 : vector<1x256xf32> to vector<64x256xf32>
    %53 = arith.addf %50, %52 : vector<64x256xf32>
    %c0_25 = arith.constant 0 : index
    %c0_26 = arith.constant 0 : index
    %54 = vector.load %arg6[%c0_25, %c0_26] : memref<64x256xf32, #tpu.memory_space<vmem>>, vector<64x256xf32>
    tpu.vector_store %arg6[%c0_25, %c0_26], %53 {strides = array<i32>} : memref<64x256xf32, #tpu.memory_space<vmem>>, vector<64x256xf32>,
    return
  }
  func.func @transform_0(%arg0: i32) -> (i32, i32) {
    %c0_i32 = arith.constant 0 : i32
    %c0_i32_0 = arith.constant 0 : i32
    return %arg0, %c0_i32 : i32, i32
  }
  func.func @transform_1(%arg0: i32) -> (i32, i32) {
    %c0_i32 = arith.constant 0 : i32
    %c0_i32_0 = arith.constant 0 : i32
    %c0_i32_1 = arith.constant 0 : i32
    return %c0_i32, %c0_i32_0 : i32, i32
  }
  func.func @transform_2(%arg0: i32) -> (i32, i32) {
    %c0_i32 = arith.constant 0 : i32
    %c0_i32_0 = arith.constant 0 : i32
    %c0_i32_1 = arith.constant 0 : i32
    return %c0_i32, %c0_i32_0 : i32, i32
  }
  func.func @transform_3(%arg0: i32) -> (i32, i32) {
    %c0_i32 = arith.constant 0 : i32
    %c0_i32_0 = arith.constant 0 : i32
    %c0_i32_1 = arith.constant 0 : i32
    return %c0_i32, %c0_i32_0 : i32, i32
  }
  func.func @transform_4(%arg0: i32) -> (i32, i32) {
    %c0_i32 = arith.constant 0 : i32
    %c0_i32_0 = arith.constant 0 : i32
    %c0_i32_1 = arith.constant 0 : i32
    return %c0_i32, %c0_i32_0 : i32, i32
  }
  func.func @transform_5(%arg0: i32) -> (i32, i32) {
    %c0_i32 = arith.constant 0 : i32
    %c0_i32_0 = arith.constant 0 : i32
    return %arg0, %c0_i32 : i32, i32
  }
}

</mosaic_0001>

<llo_original>
// kernel: tpu_custom_call.1
$region0: #{tpu_custom_call.1}
  #allocation0 [shape = 'u32[]', space=smem, size = 0x4, offset = 0x4, fixed_abs, tag = 'smem constant byte address 0x4 - core index']
  #allocation1 [shape = 'u32[144,128]{1,0:T(1,128)}', space=vmem, size = 0x12000, scoped, tag = 'internal scratch']
  %s0 = inlined_call_operand.vmem [shape: f32[128,24], index: 0, kind: input, shape index: {}]
  %s1 = inlined_call_operand.vmem [shape: f32[24,256], index: 1, kind: input, shape index: {}]
  %s2 = inlined_call_operand.vmem [shape: f32[1,256], index: 2, kind: input, shape index: {}]
  %s3 = inlined_call_operand.hbm [shape: f32[128,256], index: 3, kind: input, shape index: {}]
  %s4 = inlined_call_operand.vmem [shape: f32[1,256], index: 4, kind: input, shape index: {}]
  %s5 = inlined_call_operand.hbm [shape: f32[128,256], index: 5, kind: output, shape index: {}]
  %s6 = sld [smem:[#allocation0]]
  $region57: #{tpu_custom_call.1} parent=0
    _
  %s8 = ssub.s32 1, %s6
  %s9 = scalar_select 0, %s8, %s6
  $region1: #{tpu_custom_call.1} parent=0
    #allocation2 [shape = 'u8[131072]{0}', space=vmem, size = 0x20000, scoped, tag = 'input window, operand 3, single buffered']
    #allocation3 [shape = 's32[2]{0}', space=sflag, size = 0x8, scoped, tag = 'scoped memory for tpu_custom_call.1']
    #allocation4 [shape = 's32[2]{0}', space=sflag, size = 0x8, scoped, tag = 'scoped memory for tpu_custom_call.1']
    #allocation5 [shape = 'u8[131072]{0}', space=vmem, size = 0x20000, scoped, tag = 'output window, operand 0']
    %10 = vsyncpa [#allocation3], 0
    %11 = vsyncpa [#allocation4], 0
    %s12 = scalar_lea.sflag [#allocation4], 1
    %13 = vsyncpa %s12, 0
    loop: start=0, step=1, limit=4
    $region2: #{tpu_custom_call.1} parent=1 // loop_pre_header
      _
    $region3: #{tpu_custom_call.1} parent=1 // loop_header
      %s15 = sphi 0, %s19
      %p16 = scmp.ge.s32.totalorder %s15, 4
      %s25 = sphi 0, %s27
      %s28 = sphi 0, %s25
      %s29 = sphi 0, %s28
      %s45 = sphi 0, %s29
      %s49 = sphi 0, %s49
      %s51 = sphi 0, %s49
      %s52 = sphi 0, %s51
      %s66 = sphi 0, %s52
      %s70 = sphi 0, %s70
      %s72 = sphi 0, %s70
      %s73 = sphi 0, %s72
      %s87 = sphi 0, %s73
      %s91 = sphi 0, %s91
      %s93 = sphi 0, %s91
      %s94 = sphi 0, %s93
      %s108 = sphi 0, %s94
      %s112 = sphi 0, %s112
      %s114 = sphi 0, %s112
      %s115 = sphi 0, %s114
      %s129 = sphi 0, %s115
      %s135 = sphi 0, %s137
      %s138 = sphi 0, %s135
      %s139 = sphi 0, %s138
      %s155 = sphi 0, %s139
    $region4: #{tpu_custom_call.1} parent=1 // loop_header_branch
      %18 = sbr.rel (%p16) target = $region8
    $region5: #{tpu_custom_call.1} parent=1 // loop_body
      %s20 = ssub.s32 %s15, 1
      %s21 = ssub.s32 %s15, 2
      %s22 = sadd.s32 %s15, 1
      %s23 = ssub.s32 %s15, %s22
      %p24 = scmp.eq.s32.totalorder %s23, 0
      %s26 = sadd.s32 %s25, 1
      %s27 = scalar_select %p24, %s25, %s26
      %p30 = pneg %p24
      %p31 = scmp.eq.s32.totalorder %s15, 1
      %p32 = por %p30, %p31
      %p33 = scmp.ne.s32.totalorder %s25, %s28
      %p34 = scmp.eq.s32.totalorder %s15, 0
      %p35 = por %p33, %p34
      %p36 = scmp.ne.s32.totalorder %s25, %s28
      %p37 = scmp.eq.s32.totalorder %s20, 1
      %p38 = por %p36, %p37
      %p39 = scmp.ne.s32.totalorder %s28, %s29
      %p40 = scmp.eq.s32.totalorder %s20, 0
      %p41 = por %p39, %p40
      %p42 = scmp.ne.s32.totalorder %s28, %s29
      %p43 = scmp.eq.s32.totalorder %s21, 1
      %p44 = por %p42, %p43
      %p46 = scmp.ne.s32.totalorder %s29, %s45
      %p47 = scmp.eq.s32.totalorder %s21, 0
      %p48 = por %p46, %p47
      %s50 = sadd.s32 %s49, 1
      %p53 = scmp.eq.s32.totalorder %s15, 1
      %p54 = scmp.ne.s32.totalorder %s49, %s51
      %p55 = scmp.eq.s32.totalorder %s15, 0
      %p56 = por %p54, %p55
      %p57 = scmp.ne.s32.totalorder %s49, %s51
      %p58 = scmp.eq.s32.totalorder %s20, 1
      %p59 = por %p57, %p58
      %p60 = scmp.ne.s32.totalorder %s51, %s52
      %p61 = scmp.eq.s32.totalorder %s20, 0
      %p62 = por %p60, %p61
      %p63 = scmp.ne.s32.totalorder %s51, %s52
      %p64 = scmp.eq.s32.totalorder %s21, 1
      %p65 = por %p63, %p64
      %p67 = scmp.ne.s32.totalorder %s52, %s66
      %p68 = scmp.eq.s32.totalorder %s21, 0
      %p69 = por %p67, %p68
      %s71 = sadd.s32 %s70, 1
      %p74 = scmp.eq.s32.totalorder %s15, 1
      %p75 = scmp.ne.s32.totalorder %s70, %s72
      %p76 = scmp.eq.s32.totalorder %s15, 0
      %p77 = por %p75, %p76
      %p78 = scmp.ne.s32.totalorder %s70, %s72
      %p79 = scmp.eq.s32.totalorder %s20, 1
      %p80 = por %p78, %p79
      %p81 = scmp.ne.s32.totalorder %s72, %s73
      %p82 = scmp.eq.s32.totalorder %s20, 0
      %p83 = por %p81, %p82
      %p84 = scmp.ne.s32.totalorder %s72, %s73
      %p85 = scmp.eq.s32.totalorder %s21, 1
      %p86 = por %p84, %p85
      %p88 = scmp.ne.s32.totalorder %s73, %s87
      %p89 = scmp.eq.s32.totalorder %s21, 0
      %p90 = por %p88, %p89
      %s92 = sadd.s32 %s91, 1
      %p95 = scmp.eq.s32.totalorder %s15, 1
      %p96 = scmp.ne.s32.totalorder %s91, %s93
      %p97 = scmp.eq.s32.totalorder %s15, 0
      %p98 = por %p96, %p97
      %p99 = scmp.ne.s32.totalorder %s91, %s93
      %p100 = scmp.eq.s32.totalorder %s20, 1
      %p101 = por %p99, %p100
      %p102 = scmp.ne.s32.totalorder %s93, %s94
      %p103 = scmp.eq.s32.totalorder %s20, 0
      %p104 = por %p102, %p103
      %p105 = scmp.ne.s32.totalorder %s93, %s94
      %p106 = scmp.eq.s32.totalorder %s21, 1
      %p107 = por %p105, %p106
      %p109 = scmp.ne.s32.totalorder %s94, %s108
      %p110 = scmp.eq.s32.totalorder %s21, 0
      %p111 = por %p109, %p110
      %s113 = sadd.s32 %s112, 1
      %p116 = scmp.eq.s32.totalorder %s15, 1
      %p117 = scmp.ne.s32.totalorder %s112, %s114
      %p118 = scmp.eq.s32.totalorder %s15, 0
      %p119 = por %p117, %p118
      %p120 = scmp.ne.s32.totalorder %s112, %s114
      %p121 = scmp.eq.s32.totalorder %s20, 1
      %p122 = por %p120, %p121
      %p123 = scmp.ne.s32.totalorder %s114, %s115
      %p124 = scmp.eq.s32.totalorder %s20, 0
      %p125 = por %p123, %p124
      %p126 = scmp.ne.s32.totalorder %s114, %s115
      %p127 = scmp.eq.s32.totalorder %s21, 1
      %p128 = por %p126, %p127
      %p130 = scmp.ne.s32.totalorder %s115, %s129
      %p131 = scmp.eq.s32.totalorder %s21, 0
      %p132 = por %p130, %p131
      %s133 = ssub.s32 %s15, %s22
      %p134 = scmp.eq.s32.totalorder %s133, 0
      %s136 = sadd.s32 %s135, 1
      %s137 = scalar_select %p134, %s135, %s136
      %p140 = pneg %p134
      %p141 = scmp.eq.s32.totalorder %s15, 1
      %p142 = por %p140, %p141
      %p143 = scmp.ne.s32.totalorder %s135, %s138
      %p144 = scmp.eq.s32.totalorder %s15, 0
      %p145 = por %p143, %p144
      %p146 = scmp.ne.s32.totalorder %s135, %s138
      %p147 = scmp.eq.s32.totalorder %s20, 1
      %p148 = por %p146, %p147
      %p149 = scmp.ne.s32.totalorder %s138, %s139
      %p150 = scmp.eq.s32.totalorder %s20, 0
      %p151 = por %p149, %p150
      %p152 = scmp.ne.s32.totalorder %s138, %s139
      %p153 = scmp.eq.s32.totalorder %s21, 1
      %p154 = por %p152, %p153
      %p156 = scmp.ne.s32.totalorder %s139, %s155
      %p157 = scmp.eq.s32.totalorder %s21, 0
      %p158 = por %p156, %p157
      %p159 = scmp.le.s32.totalorder 1, %s15
      %p160 = scmp.lt.s32.totalorder %s15, 3
      %p161 = pnand %p159, %p160
      %p162 = pneg %p161
      // Predicated region
      $region9: #{tpu_custom_call.1} parent=5 // pred_check
        _
      $region10: #{tpu_custom_call.1} parent=5 // pred_check_branch
        %164 = sbr.rel (%p161) target = $region12
      $region11: #{tpu_custom_call.1} parent=5 // pred_region
        %s165 = ssub.s32 %s15, 1
        // Predicated region
        $region13: #{tpu_custom_call.1} parent=11 // pred_check
          %p166 = pneg %p62
        $region14: #{tpu_custom_call.1} parent=11 // pred_check_branch
          %168 = sbr.rel (%p166) target = $region16
        $region15: #{tpu_custom_call.1} parent=11 // pred_region
          _
        $region16: #{tpu_custom_call.1} parent=11 // pred_fallthru
          _
        // Predicated region
        $region17: #{tpu_custom_call.1} parent=11 // pred_check
          %p169 = pneg %p83
        $region18: #{tpu_custom_call.1} parent=11 // pred_check_branch
          %171 = sbr.rel (%p169) target = $region20
        $region19: #{tpu_custom_call.1} parent=11 // pred_region
          _
        $region20: #{tpu_custom_call.1} parent=11 // pred_fallthru
          _
        // Predicated region
        $region21: #{tpu_custom_call.1} parent=11 // pred_check
          %p172 = pneg %p104
        $region22: #{tpu_custom_call.1} parent=11 // pred_check_branch
          %174 = sbr.rel (%p172) target = $region24
        $region23: #{tpu_custom_call.1} parent=11 // pred_region
          %s176 = ssub.s32 4096, 4096
          %177 = vsyncadd [#allocation3], %s176
          %s178 = sshll.u32 [#allocation2], 4
          %s179 = int_to_ptr.vmem [resolvable:$true] %s178
          %184 = dma.hbm_to_vmem [thread:$0]  %s3, 4096, %s179, [#allocation3], 256, 256, 16
        $region24: #{tpu_custom_call.1} parent=11 // pred_fallthru
          _
        // Predicated region
        $region25: #{tpu_custom_call.1} parent=11 // pred_check
          %p185 = pneg %p125
        $region26: #{tpu_custom_call.1} parent=11 // pred_check_branch
          %187 = sbr.rel (%p185) target = $region28
        $region27: #{tpu_custom_call.1} parent=11 // pred_region
          _
        $region28: #{tpu_custom_call.1} parent=11 // pred_fallthru
          _
      $region12: #{tpu_custom_call.1} parent=5 // pred_fallthru
        _
      %p188 = scmp.lt.s32.totalorder %s15, 2
      // Predicated region
      $region29: #{tpu_custom_call.1} parent=5 // pred_check
        %p189 = pneg %p188
      $region30: #{tpu_custom_call.1} parent=5 // pred_check_branch
        %191 = sbr.rel (%p189) target = $region32
      $region31: #{tpu_custom_call.1} parent=5 // pred_region
        // Predicated region
        $region33: #{tpu_custom_call.1} parent=31 // pred_check
          %p192 = pneg %p35
        $region34: #{tpu_custom_call.1} parent=31 // pred_check_branch
          %194 = sbr.rel (%p192) target = $region36
        $region35: #{tpu_custom_call.1} parent=31 // pred_region
          %s195 = smul.u32 8, %s15
          %p196 = scmp.lt.s32.totalorder %s195, 15
          %s197 = scalar_select %p196, %s195, 15
          %s198 = smul.addr %s197, 8
          %s199 = scalar_lea.vmem %s0, %s198
          %s200 = smul.u32 8, %s15
        $region36: #{tpu_custom_call.1} parent=31 // pred_fallthru
          _
      $region32: #{tpu_custom_call.1} parent=5 // pred_fallthru
        _
      %p201 = scmp.le.s32.totalorder 1, %s15
      %p202 = scmp.lt.s32.totalorder %s15, 3
      %p203 = pnand %p201, %p202
      %p204 = pneg %p203
      // Predicated region
      $region37: #{tpu_custom_call.1} parent=5 // pred_check
        _
      $region38: #{tpu_custom_call.1} parent=5 // pred_check_branch
        %206 = sbr.rel (%p203) target = $region40
      $region39: #{tpu_custom_call.1} parent=5 // pred_region
        %s207 = ssub.s32 %s15, 1
        // Predicated region
        $region41: #{tpu_custom_call.1} parent=39 // pred_check
          %p208 = pneg %p104
        $region42: #{tpu_custom_call.1} parent=39 // pred_check_branch
          %210 = sbr.rel (%p208) target = $region44
        $region43: #{tpu_custom_call.1} parent=39 // pred_region
          %211 = dma.done [#allocation3], 4096
        $region44: #{tpu_custom_call.1} parent=39 // pred_fallthru
          _
        %s212 = smul.u32 8, %s20
        %p213 = scmp.lt.s32.totalorder %s212, 15
        %s214 = scalar_select %p213, %s212, 15
        %s215 = smul.addr %s214, 8
        %s216 = scalar_lea.vmem %s0, %s215
        %p217 = pneg %p41
        %p218 = pneg %p38
        %p219 = pneg %p62
        %p220 = pneg %p59
        %p221 = pneg %p83
        %p222 = pneg %p80
        %p223 = pneg %p104
        %p224 = pneg %p101
        %p225 = pneg %p125
        %p226 = pneg %p122
        %p227 = pneg %p151
        %p228 = pneg %p148
        %s229 = sand.u32 %s138, 1
        %s230 = scalar_lea.sflag [#allocation4], %s229
        %s231 = sand.u32 %s138, 1
        %s232 = smul.addr %s231, 128
        %s233 = scalar_lea.vmem [#allocation5], %s232
        %s234 = smul.u32 8, %s20
        %p235 = scmp.lt.s32.totalorder %s234, 15
        %s236 = scalar_select %p235, %s234, 15
        %s237 = smul.addr %s236, 8
        %s238 = scalar_lea.vmem %s0, %s237
        %s239 = smul.u32 8, %s20
        %s240 = smul.u32 8, %s20
        %v241 = vld [vmem:[%s238] sm:$0xff]
        %v242 = vld [vmem:[%s238 + $0x8] sm:$0xff]
        %v243 = vld [vmem:[%s238 + $0x10] sm:$0xff]
        %v244 = vld [vmem:[%s238 + $0x18] sm:$0xff]
        %v245 = vld [vmem:[%s238 + $0x20] sm:$0xff]
        %v246 = vld [vmem:[%s238 + $0x28] sm:$0xff]
        %v247 = vld [vmem:[%s238 + $0x30] sm:$0xff]
        %v248 = vld [vmem:[%s238 + $0x38] sm:$0xff]
        %v249 = vld [vmem:[%s1] sm:$0xff]
        %v250 = vld [vmem:[%s1 + $0x8] sm:$0xff]
        %v251 = vld [vmem:[%s1 + $0x10] sm:$0xff]
        %v252 = vld [vmem:[%s1 + $0x18] sm:$0xff]
        %v253 = vld [vmem:[%s1 + $0x20] sm:$0xff]
        %v254 = vld [vmem:[%s1 + $0x28] sm:$0xff]
        %v255 = vld [vmem:[%s2] sm:$0x3]
        %v257 = vlaneseq
        %v258 = vshrl.u32 %v257, 7
        %v259 = vsub.s32 0, %v258
        %v260 = vrot.slane %v255, %v259
        %v261 = vlaneseq
        %v262 = vshrl.u32 %v261, 7
        %v263 = vsub.s32 1, %v262
        %v264 = vrot.slane %v255, %v263
        %vm267 = vcmask 195584
        %v269 = vsel %vm267, %v241, 0
        %v272 = vsel %vm267, %v242, 0
        %v275 = vsel %vm267, %v243, 0
        %v278 = vsel %vm267, %v244, 0
        %v281 = vsel %vm267, %v245, 0
        %v284 = vsel %vm267, %v246, 0
        %v287 = vsel %vm267, %v247, 0
        %v290 = vsel %vm267, %v248, 0
        %292 = vmatprep.subr.mxu0 %v250
        %293 = vmatpush1.msra.mxu0 %v249
        %294 = vmatprep.subr.mxu0 %v252
        %295 = vmatpush1.msra.mxu0 %v251
        %296 = vmatprep.subr.mxu0 %v254
        %297 = vmatpush1.msra.mxu0 %v253
        %298 = vmatprep.subr.mxu0 0.0
        %299 = vmatpush1.msra.mxu0 0.0
        %300 = vmatprep.subr.mxu0 0.0
        %301 = vmatpush1.msra.mxu0 0.0
        %302 = vmatprep.subr.mxu0 0.0
        %303 = vmatpush1.msra.mxu0 0.0
        %304 = vmatprep.subr.mxu0 0.0
        %305 = vmatpush1.msra.mxu0 0.0
        %306 = vmatprep.subr.mxu0 0.0
        %307 = vmatpush1.msra.mxu0 0.0
        %308 = vmatprep.subr.mxu0 0.0
        %309 = vmatpush1.msra.mxu0 0.0
        %310 = vmatprep.subr.mxu0 0.0
        %311 = vmatpush1.msra.mxu0 0.0
        %312 = vmatprep.subr.mxu0 0.0
        %313 = vmatpush1.msra.mxu0 0.0
        %314 = vmatprep.subr.mxu0 0.0
        %315 = vmatpush1.msra.mxu0 0.0
        %316 = vmatprep.subr.mxu0 0.0
        %317 = vmatpush1.msra.mxu0 0.0
        %318 = vmatprep.subr.mxu0 0.0
        %319 = vmatpush1.msra.mxu0 0.0
        %320 = vmatprep.subr.mxu0 0.0
        %321 = vmatpush1.msra.mxu0 0.0
        %322 = vmatprep.subr.mxu0 0.0
        %323 = vmatpush1.msra.mxu0 0.0
        %324 = vmatprep.subr.mxu0 0.0
        %325 = vmatpush1.msra.mxu0 0.0
        %326 = vmatprep.subr.mxu0 0.0
        %327 = vmatpush1.msra.mxu0 0.0
        %328 = vmatprep.subr.mxu0 0.0
        %329 = vmatpush1.msra.mxu0 0.0
        %330 = vmatprep.subr.mxu0 0.0
        %331 = vmatpush1.msra.mxu0 0.0
        %332 = vmatprep.subr.mxu0 0.0
        %333 = vmatpush1.msra.mxu0 0.0
        %334 = vmatprep.subr.mxu0 0.0
        %335 = vmatpush1.msra.mxu0 0.0
        %336 = vmatprep.subr.mxu0 0.0
        %337 = vmatpush1.msra.mxu0 0.0
        %338 = vmatprep.subr.mxu0 0.0
        %339 = vmatpush1.msra.mxu0 0.0
        %340 = vmatprep.subr.mxu0 0.0
        %341 = vmatpush1.msra.mxu0 0.0
        %342 = vmatprep.subr.mxu0 0.0
        %343 = vmatpush1.msra.mxu0 0.0
        %344 = vmatprep.subr.mxu0 0.0
        %345 = vmatpush1.msra.mxu0 0.0
        %346 = vmatprep.subr.mxu0 0.0
        %347 = vmatpush1.msra.mxu0 0.0
        %348 = vmatprep.subr.mxu0 0.0
        %349 = vmatpush1.msra.mxu0 0.0
        %350 = vmatprep.subr.mxu0 0.0
        %351 = vmatpush1.msra.mxu0 0.0
        %352 = vmatprep.subr.mxu0 0.0
        %353 = vmatpush1.msra.mxu0 0.0
        %354 = vmatprep.subr.mxu0 0.0
        %355 = vmatpush1.msra.mxu0 0.0
        %356 = vmatprep.mubr.f32.mxu0 0.0
        %357 = vmatmul.mubr.f32.gmra.mrb[0].mxu0 %v269
        %v358 = vpop.f32.mrb[0].mxu0
        %v359 = vadd.f32 %v260, %v358
        %v360 = vpop.f32.mrb[0].mxu0
        %v361 = vadd.f32 %v264, %v360
        %362 = vmatprep.mubr.f32.mxu0 0.0
        %363 = vmatmul.mubr.f32.gmra.mrb[0].mxu0 %v272
        %v364 = vpop.f32.mrb[0].mxu0
        %v365 = vadd.f32 %v260, %v364
        %v366 = vpop.f32.mrb[0].mxu0
        %v367 = vadd.f32 %v264, %v366
        %368 = vmatprep.mubr.f32.mxu0 0.0
        %369 = vmatmul.mubr.f32.gmra.mrb[0].mxu0 %v275
        %v370 = vpop.f32.mrb[0].mxu0
        %v371 = vadd.f32 %v260, %v370
        %v372 = vpop.f32.mrb[0].mxu0
        %v373 = vadd.f32 %v264, %v372
        %374 = vmatprep.mubr.f32.mxu0 0.0
        %375 = vmatmul.mubr.f32.gmra.mrb[0].mxu0 %v278
        %v376 = vpop.f32.mrb[0].mxu0
        %v377 = vadd.f32 %v260, %v376
        %v378 = vpop.f32.mrb[0].mxu0
        %v379 = vadd.f32 %v264, %v378
        %380 = vmatprep.mubr.f32.mxu0 0.0
        %381 = vmatmul.mubr.f32.gmra.mrb[0].mxu0 %v281
        %v382 = vpop.f32.mrb[0].mxu0
        %v383 = vadd.f32 %v260, %v382
        %v384 = vpop.f32.mrb[0].mxu0
        %v385 = vadd.f32 %v264, %v384
        %386 = vmatprep.mubr.f32.mxu0 0.0
        %387 = vmatmul.mubr.f32.gmra.mrb[0].mxu0 %v284
        %v388 = vpop.f32.mrb[0].mxu0
        %v389 = vadd.f32 %v260, %v388
        %v390 = vpop.f32.mrb[0].mxu0
        %v391 = vadd.f32 %v264, %v390
        %392 = vmatprep.mubr.f32.mxu0 0.0
        %393 = vmatmul.mubr.f32.gmra.mrb[0].mxu0 %v287
        %v394 = vpop.f32.mrb[0].mxu0
        %v395 = vadd.f32 %v260, %v394
        %v396 = vpop.f32.mrb[0].mxu0
        %v397 = vadd.f32 %v264, %v396
        %398 = vmatprep.mubr.f32.mxu0 0.0
        %399 = vmatmul.mubr.f32.gmra.mrb[0].mxu0 %v290
        %v400 = vpop.f32.mrb[0].mxu0
        %v401 = vadd.f32 %v260, %v400
        %v402 = vpop.f32.mrb[0].mxu0
        %v403 = vadd.f32 %v264, %v402
        %404 = vdwg.mxu0
        %v405 = vmul.f32 %v359, 0.5
        %v406 = vmul.f32 %v365, 0.5
        %v407 = vmul.f32 %v371, 0.5
        %v408 = vmul.f32 %v377, 0.5
        %v409 = vmul.f32 %v383, 0.5
        %v410 = vmul.f32 %v389, 0.5
        %v411 = vmul.f32 %v395, 0.5
        %v412 = vmul.f32 %v401, 0.5
        %v413 = vmul.f32 %v359, 0.70710677
        %v414 = vmul.f32 %v365, 0.70710677
        %v415 = vmul.f32 %v371, 0.70710677
        %v416 = vmul.f32 %v377, 0.70710677
        %v417 = vmul.f32 %v383, 0.70710677
        %v418 = vmul.f32 %v389, 0.70710677
        %v419 = vmul.f32 %v395, 0.70710677
        %v420 = vmul.f32 %v401, 0.70710677
        %v421 = vand.u32 2147483647, %v413
        %v422 = vand.u32 2147483647, %v414
        %v423 = vand.u32 2147483647, %v415
        %v424 = vand.u32 2147483647, %v416
        %v425 = vand.u32 2147483647, %v417
        %v426 = vand.u32 2147483647, %v418
        %v427 = vand.u32 2147483647, %v419
        %v428 = vand.u32 2147483647, %v420
        %v429 = vmul.f32 %v421, 0.3275911
        %v430 = vmul.f32 %v422, 0.3275911
        %v431 = vmul.f32 %v423, 0.3275911
        %v432 = vmul.f32 %v424, 0.3275911
        %v433 = vmul.f32 %v425, 0.3275911
        %v434 = vmul.f32 %v426, 0.3275911
        %v435 = vmul.f32 %v427, 0.3275911
        %v436 = vmul.f32 %v428, 0.3275911
        %v437 = vadd.f32 %v429, 1.0
        %v438 = vadd.f32 %v430, 1.0
        %v439 = vadd.f32 %v431, 1.0
        %v440 = vadd.f32 %v432, 1.0
        %v441 = vadd.f32 %v433, 1.0
        %v442 = vadd.f32 %v434, 1.0
        %v443 = vadd.f32 %v435, 1.0
        %v444 = vadd.f32 %v436, 1.0
        %v445 = vrcp.pop %v437
        %v446 = vmul.f32 1.0, %v445
        %v447 = vrcp.pop %v438
        %v448 = vmul.f32 1.0, %v447
        %v449 = vrcp.pop %v439
        %v450 = vmul.f32 1.0, %v449
        %v451 = vrcp.pop %v440
        %v452 = vmul.f32 1.0, %v451
        %v453 = vrcp.pop %v441
        %v454 = vmul.f32 1.0, %v453
        %v455 = vrcp.pop %v442
        %v456 = vmul.f32 1.0, %v455
        %v457 = vrcp.pop %v443
        %v458 = vmul.f32 1.0, %v457
        %v459 = vrcp.pop %v444
        %v460 = vmul.f32 1.0, %v459
        %v461 = vmul.f32 %v446, 1.0614054
        %v462 = vmul.f32 %v448, 1.0614054
        %v463 = vmul.f32 %v450, 1.0614054
        %v464 = vmul.f32 %v452, 1.0614054
        %v465 = vmul.f32 %v454, 1.0614054
        %v466 = vmul.f32 %v456, 1.0614054
        %v467 = vmul.f32 %v458, 1.0614054
        %v468 = vmul.f32 %v460, 1.0614054
        %v469 = vadd.f32 %v461, -1.4531521
        %v470 = vadd.f32 %v462, -1.4531521
        %v471 = vadd.f32 %v463, -1.4531521
        %v472 = vadd.f32 %v464, -1.4531521
        %v473 = vadd.f32 %v465, -1.4531521
        %v474 = vadd.f32 %v466, -1.4531521
        %v475 = vadd.f32 %v467, -1.4531521
        %v476 = vadd.f32 %v468, -1.4531521
        %v477 = vmul.f32 %v469, %v446
        %v478 = vmul.f32 %v470, %v448
        %v479 = vmul.f32 %v471, %v450
        %v480 = vmul.f32 %v472, %v452
        %v481 = vmul.f32 %v473, %v454
        %v482 = vmul.f32 %v474, %v456
        %v483 = vmul.f32 %v475, %v458
        %v484 = vmul.f32 %v476, %v460
        %v485 = vadd.f32 %v477, 1.4214138
        %v486 = vadd.f32 %v478, 1.4214138
        %v487 = vadd.f32 %v479, 1.4214138
        %v488 = vadd.f32 %v480, 1.4214138
        %v489 = vadd.f32 %v481, 1.4214138
        %v490 = vadd.f32 %v482, 1.4214138
        %v491 = vadd.f32 %v483, 1.4214138
        %v492 = vadd.f32 %v484, 1.4214138
        %v493 = vmul.f32 %v485, %v446
        %v494 = vmul.f32 %v486, %v448
        %v495 = vmul.f32 %v487, %v450
        %v496 = vmul.f32 %v488, %v452
        %v497 = vmul.f32 %v489, %v454
        %v498 = vmul.f32 %v490, %v456
        %v499 = vmul.f32 %v491, %v458
        %v500 = vmul.f32 %v492, %v460
        %v501 = vadd.f32 %v493, -0.28449672
        %v502 = vadd.f32 %v494, -0.28449672
        %v503 = vadd.f32 %v495, -0.28449672
        %v504 = vadd.f32 %v496, -0.28449672
        %v505 = vadd.f32 %v497, -0.28449672
        %v506 = vadd.f32 %v498, -0.28449672
        %v507 = vadd.f32 %v499, -0.28449672
        %v508 = vadd.f32 %v500, -0.28449672
        %v509 = vmul.f32 %v501, %v446
        %v510 = vmul.f32 %v502, %v448
        %v511 = vmul.f32 %v503, %v450
        %v512 = vmul.f32 %v504, %v452
        %v513 = vmul.f32 %v505, %v454
        %v514 = vmul.f32 %v506, %v456
        %v515 = vmul.f32 %v507, %v458
        %v516 = vmul.f32 %v508, %v460
        %v517 = vadd.f32 %v509, 0.2548296
        %v518 = vadd.f32 %v510, 0.2548296
        %v519 = vadd.f32 %v511, 0.2548296
        %v520 = vadd.f32 %v512, 0.2548296
        %v521 = vadd.f32 %v513, 0.2548296
        %v522 = vadd.f32 %v514, 0.2548296
        %v523 = vadd.f32 %v515, 0.2548296
        %v524 = vadd.f32 %v516, 0.2548296
        %v525 = vmul.f32 %v517, %v446
        %v526 = vmul.f32 %v518, %v448
        %v527 = vmul.f32 %v519, %v450
        %v528 = vmul.f32 %v520, %v452
        %v529 = vmul.f32 %v521, %v454
        %v530 = vmul.f32 %v522, %v456
        %v531 = vmul.f32 %v523, %v458
        %v532 = vmul.f32 %v524, %v460
        %v533 = vsub.f32 0.0, %v421
        %v534 = vsub.f32 0.0, %v422
        %v535 = vsub.f32 0.0, %v423
        %v536 = vsub.f32 0.0, %v424
        %v537 = vsub.f32 0.0, %v425
        %v538 = vsub.f32 0.0, %v426
        %v539 = vsub.f32 0.0, %v427
        %v540 = vsub.f32 0.0, %v428
        %v541 = vmul.f32 %v533, %v421
        %v542 = vmul.f32 %v534, %v422
        %v543 = vmul.f32 %v535, %v423
        %v544 = vmul.f32 %v536, %v424
        %v545 = vmul.f32 %v537, %v425
        %v546 = vmul.f32 %v538, %v426
        %v547 = vmul.f32 %v539, %v427
        %v548 = vmul.f32 %v540, %v428
        %v549 = vmul.f32 %v541, 1.442695
        %v550 = vpow.pop %v549
        %v551 = vmul.f32 %v542, 1.442695
        %v552 = vpow.pop %v551
        %v553 = vmul.f32 %v543, 1.442695
        %v554 = vpow.pop %v553
        %v555 = vmul.f32 %v544, 1.442695
        %v556 = vpow.pop %v555
        %v557 = vmul.f32 %v545, 1.442695
        %v558 = vpow.pop %v557
        %v559 = vmul.f32 %v546, 1.442695
        %v560 = vpow.pop %v559
        %v561 = vmul.f32 %v547, 1.442695
        %v562 = vpow.pop %v561
        %v563 = vmul.f32 %v548, 1.442695
        %v564 = vpow.pop %v563
        %v565 = vmul.f32 %v525, %v550
        %v566 = vmul.f32 %v526, %v552
        %v567 = vmul.f32 %v527, %v554
        %v568 = vmul.f32 %v528, %v556
        %v569 = vmul.f32 %v529, %v558
        %v570 = vmul.f32 %v530, %v560
        %v571 = vmul.f32 %v531, %v562
        %v572 = vmul.f32 %v532, %v564
        %v573 = vsub.f32 1.0, %v565
        %v574 = vsub.f32 1.0, %v566
        %v575 = vsub.f32 1.0, %v567
        %v576 = vsub.f32 1.0, %v568
        %v577 = vsub.f32 1.0, %v569
        %v578 = vsub.f32 1.0, %v570
        %v579 = vsub.f32 1.0, %v571
        %v580 = vsub.f32 1.0, %v572
        %vm581 = vcmp.lt.f32.partialorder %v413, 0.0
        %vm582 = vcmp.lt.f32.partialorder %v414, 0.0
        %vm583 = vcmp.lt.f32.partialorder %v415, 0.0
        %vm584 = vcmp.lt.f32.partialorder %v416, 0.0
        %vm585 = vcmp.lt.f32.partialorder %v417, 0.0
        %vm586 = vcmp.lt.f32.partialorder %v418, 0.0
        %vm587 = vcmp.lt.f32.partialorder %v419, 0.0
        %vm588 = vcmp.lt.f32.partialorder %v420, 0.0
        %v589 = vsub.f32 0.0, %v573
        %v590 = vsub.f32 0.0, %v574
        %v591 = vsub.f32 0.0, %v575
        %v592 = vsub.f32 0.0, %v576
        %v593 = vsub.f32 0.0, %v577
        %v594 = vsub.f32 0.0, %v578
        %v595 = vsub.f32 0.0, %v579
        %v596 = vsub.f32 0.0, %v580
        %v597 = vsel %vm581, %v589, %v573
        %v598 = vsel %vm582, %v590, %v574
        %v599 = vsel %vm583, %v591, %v575
        %v600 = vsel %vm584, %v592, %v576
        %v601 = vsel %vm585, %v593, %v577
        %v602 = vsel %vm586, %v594, %v578
        %v603 = vsel %vm587, %v595, %v579
        %v604 = vsel %vm588, %v596, %v580
        %v605 = vadd.f32 %v597, 1.0
        %v606 = vadd.f32 %v598, 1.0
        %v607 = vadd.f32 %v599, 1.0
        %v608 = vadd.f32 %v600, 1.0
        %v609 = vadd.f32 %v601, 1.0
        %v610 = vadd.f32 %v602, 1.0
        %v611 = vadd.f32 %v603, 1.0
        %v612 = vadd.f32 %v604, 1.0
        %v613 = vmul.f32 %v405, %v605
        %v614 = vmul.f32 %v406, %v606
        %v615 = vmul.f32 %v407, %v607
        %v616 = vmul.f32 %v408, %v608
        %v617 = vmul.f32 %v409, %v609
        %v618 = vmul.f32 %v410, %v610
        %v619 = vmul.f32 %v411, %v611
        %v620 = vmul.f32 %v412, %v612
        %v621 = vmul.f32 %v613, %v361
        %v622 = vmul.f32 %v614, %v367
        %v623 = vmul.f32 %v615, %v373
        %v624 = vmul.f32 %v616, %v379
        %v625 = vmul.f32 %v617, %v385
        %v626 = vmul.f32 %v618, %v391
        %v627 = vmul.f32 %v619, %v397
        %v628 = vmul.f32 %v620, %v403
        %v629 = vld [vmem:[#allocation2] sm:$0xff]
        %v630 = vld [vmem:[#allocation2 + $0x8] sm:$0xff]
        %v631 = vld [vmem:[#allocation2 + $0x10] sm:$0xff]
        %v632 = vld [vmem:[#allocation2 + $0x18] sm:$0xff]
        %v633 = vld [vmem:[#allocation2 + $0x20] sm:$0xff]
        %v634 = vld [vmem:[#allocation2 + $0x28] sm:$0xff]
        %v635 = vld [vmem:[#allocation2 + $0x30] sm:$0xff]
        %v636 = vld [vmem:[#allocation2 + $0x38] sm:$0xff]
        %v637 = vld [vmem:[#allocation2 + $0x40] sm:$0xff]
        %v638 = vld [vmem:[#allocation2 + $0x48] sm:$0xff]
        %v639 = vld [vmem:[#allocation2 + $0x50] sm:$0xff]
        %v640 = vld [vmem:[#allocation2 + $0x58] sm:$0xff]
        %v641 = vld [vmem:[#allocation2 + $0x60] sm:$0xff]
        %v642 = vld [vmem:[#allocation2 + $0x68] sm:$0xff]
        %v643 = vld [vmem:[#allocation2 + $0x70] sm:$0xff]
        %v644 = vld [vmem:[#allocation2 + $0x78] sm:$0xff]
        %v645 = vld [vmem:[#allocation2 + $0x80] sm:$0xff]
        %v646 = vld [vmem:[#allocation2 + $0x88] sm:$0xff]
        %v647 = vld [vmem:[#allocation2 + $0x90] sm:$0xff]
        %v648 = vld [vmem:[#allocation2 + $0x98] sm:$0xff]
        %v649 = vld [vmem:[#allocation2 + $0xa0] sm:$0xff]
        %v650 = vld [vmem:[#allocation2 + $0xa8] sm:$0xff]
        %v651 = vld [vmem:[#allocation2 + $0xb0] sm:$0xff]
        %v652 = vld [vmem:[#allocation2 + $0xb8] sm:$0xff]
        %v653 = vld [vmem:[#allocation2 + $0xc0] sm:$0xff]
        %v654 = vld [vmem:[#allocation2 + $0xc8] sm:$0xff]
        %v655 = vld [vmem:[#allocation2 + $0xd0] sm:$0xff]
        %v656 = vld [vmem:[#allocation2 + $0xd8] sm:$0xff]
        %v657 = vld [vmem:[#allocation2 + $0xe0] sm:$0xff]
        %v658 = vld [vmem:[#allocation2 + $0xe8] sm:$0xff]
        %v659 = vld [vmem:[#allocation2 + $0xf0] sm:$0xff]
        %v660 = vld [vmem:[#allocation2 + $0xf8] sm:$0xff]
        %v661 = vld [vmem:[%s4] sm:$0x3]
        %v663 = vlaneseq
        %v664 = vshrl.u32 %v663, 7
        %v665 = vsub.s32 0, %v664
        %v666 = vrot.slane %v661, %v665
        %v667 = vlaneseq
        %v668 = vshrl.u32 %v667, 7
        %v669 = vsub.s32 1, %v668
        %v670 = vrot.slane %v661, %v669
        %673 = vmatprep.subr.mxu0 %v630
        %674 = vmatpush1.msra.mxu0 %v629
        %675 = vmatprep.subr.mxu0 %v632
        %676 = vmatpush1.msra.mxu0 %v631
        %677 = vmatprep.subr.mxu0 %v634
        %678 = vmatpush1.msra.mxu0 %v633
        %679 = vmatprep.subr.mxu0 %v636
        %680 = vmatpush1.msra.mxu0 %v635
        %681 = vmatprep.subr.mxu0 %v638
        %682 = vmatpush1.msra.mxu0 %v637
        %683 = vmatprep.subr.mxu0 %v640
        %684 = vmatpush1.msra.mxu0 %v639
        %685 = vmatprep.subr.mxu0 %v642
        %686 = vmatpush1.msra.mxu0 %v641
        %687 = vmatprep.subr.mxu0 %v644
        %688 = vmatpush1.msra.mxu0 %v643
        %689 = vmatprep.subr.mxu0 %v646
        %690 = vmatpush1.msra.mxu0 %v645
        %691 = vmatprep.subr.mxu0 %v648
        %692 = vmatpush1.msra.mxu0 %v647
        %693 = vmatprep.subr.mxu0 %v650
        %694 = vmatpush1.msra.mxu0 %v649
        %695 = vmatprep.subr.mxu0 %v652
        %696 = vmatpush1.msra.mxu0 %v651
        %697 = vmatprep.subr.mxu0 %v654
        %698 = vmatpush1.msra.mxu0 %v653
        %699 = vmatprep.subr.mxu0 %v656
        %700 = vmatpush1.msra.mxu0 %v655
        %701 = vmatprep.subr.mxu0 %v658
        %702 = vmatpush1.msra.mxu0 %v657
        %703 = vmatprep.subr.mxu0 %v660
        %704 = vmatpush1.msra.mxu0 %v659
        %705 = vmatprep.subr.mxu0 0.0
        %706 = vmatpush1.msra.mxu0 0.0
        %707 = vmatprep.subr.mxu0 0.0
        %708 = vmatpush1.msra.mxu0 0.0
        %709 = vmatprep.subr.mxu0 0.0
        %710 = vmatpush1.msra.mxu0 0.0
        %711 = vmatprep.subr.mxu0 0.0
        %712 = vmatpush1.msra.mxu0 0.0
        %713 = vmatprep.subr.mxu0 0.0
        %714 = vmatpush1.msra.mxu0 0.0
        %715 = vmatprep.subr.mxu0 0.0
        %716 = vmatpush1.msra.mxu0 0.0
        %717 = vmatprep.subr.mxu0 0.0
        %718 = vmatpush1.msra.mxu0 0.0
        %719 = vmatprep.subr.mxu0 0.0
        %720 = vmatpush1.msra.mxu0 0.0
        %721 = vmatprep.subr.mxu0 0.0
        %722 = vmatpush1.msra.mxu0 0.0
        %723 = vmatprep.subr.mxu0 0.0
        %724 = vmatpush1.msra.mxu0 0.0
        %725 = vmatprep.subr.mxu0 0.0
        %726 = vmatpush1.msra.mxu0 0.0
        %727 = vmatprep.subr.mxu0 0.0
        %728 = vmatpush1.msra.mxu0 0.0
        %729 = vmatprep.subr.mxu0 0.0
        %730 = vmatpush1.msra.mxu0 0.0
        %731 = vmatprep.subr.mxu0 0.0
        %732 = vmatpush1.msra.mxu0 0.0
        %733 = vmatprep.subr.mxu0 0.0
        %734 = vmatpush1.msra.mxu0 0.0
        %735 = vmatprep.subr.mxu0 0.0
        %736 = vmatpush1.msra.mxu0 0.0
        %737 = vmatprep.mubr.f32.mxu0 0.0
        %738 = vmatmul.mubr.f32.gmra.mrb[0].mxu0 %v621
        %v739 = vpop.f32.mrb[0].mxu0
        %v740 = vadd.f32 %v666, %v739
        %v741 = vpop.f32.mrb[0].mxu0
        %v742 = vadd.f32 %v670, %v741
        %743 = vmatprep.mubr.f32.mxu0 0.0
        %744 = vmatmul.mubr.f32.gmra.mrb[0].mxu0 %v622
        %v745 = vpop.f32.mrb[0].mxu0
        %v746 = vadd.f32 %v666, %v745
        %v747 = vpop.f32.mrb[0].mxu0
        %v748 = vadd.f32 %v670, %v747
        %749 = vmatprep.mubr.f32.mxu0 0.0
        %750 = vmatmul.mubr.f32.gmra.mrb[0].mxu0 %v623
        %v751 = vpop.f32.mrb[0].mxu0
        %v752 = vadd.f32 %v666, %v751
        %v753 = vpop.f32.mrb[0].mxu0
        %v754 = vadd.f32 %v670, %v753
        %755 = vmatprep.mubr.f32.mxu0 0.0
        %756 = vmatmul.mubr.f32.gmra.mrb[0].mxu0 %v624
        %v757 = vpop.f32.mrb[0].mxu0
        %v758 = vadd.f32 %v666, %v757
        %v759 = vpop.f32.mrb[0].mxu0
        %v760 = vadd.f32 %v670, %v759
        %761 = vmatprep.mubr.f32.mxu0 0.0
        %762 = vmatmul.mubr.f32.gmra.mrb[0].mxu0 %v625
        %v763 = vpop.f32.mrb[0].mxu0
        %v764 = vadd.f32 %v666, %v763
        %v765 = vpop.f32.mrb[0].mxu0
        %v766 = vadd.f32 %v670, %v765
        %767 = vmatprep.mubr.f32.mxu0 0.0
        %768 = vmatmul.mubr.f32.gmra.mrb[0].mxu0 %v626
        %v769 = vpop.f32.mrb[0].mxu0
        %v770 = vadd.f32 %v666, %v769
        %v771 = vpop.f32.mrb[0].mxu0
        %v772 = vadd.f32 %v670, %v771
        %773 = vmatprep.mubr.f32.mxu0 0.0
        %774 = vmatmul.mubr.f32.gmra.mrb[0].mxu0 %v627
        %v775 = vpop.f32.mrb[0].mxu0
        %v776 = vadd.f32 %v666, %v775
        %v777 = vpop.f32.mrb[0].mxu0
        %v778 = vadd.f32 %v670, %v777
        %779 = vmatprep.mubr.f32.mxu0 0.0
        %780 = vmatmul.mubr.f32.gmra.mrb[0].mxu0 %v628
        %v781 = vpop.f32.mrb[0].mxu0
        %v782 = vadd.f32 %v666, %v781
        %v783 = vpop.f32.mrb[0].mxu0
        %v784 = vadd.f32 %v670, %v783
        %785 = vdwg.mxu0
        %786 = vst [vmem:[%s233] sm:$0xff] %v740
        %787 = vst [vmem:[%s233 + $0x8] sm:$0xff] %v742
        %788 = vst [vmem:[%s233 + $0x10] sm:$0xff] %v746
        %789 = vst [vmem:[%s233 + $0x18] sm:$0xff] %v748
        %790 = vst [vmem:[%s233 + $0x20] sm:$0xff] %v752
        %791 = vst [vmem:[%s233 + $0x28] sm:$0xff] %v754
        %792 = vst [vmem:[%s233 + $0x30] sm:$0xff] %v758
        %793 = vst [vmem:[%s233 + $0x38] sm:$0xff] %v760
        %794 = vst [vmem:[%s233 + $0x40] sm:$0xff] %v764
        %795 = vst [vmem:[%s233 + $0x48] sm:$0xff] %v766
        %796 = vst [vmem:[%s233 + $0x50] sm:$0xff] %v770
        %797 = vst [vmem:[%s233 + $0x58] sm:$0xff] %v772
        %798 = vst [vmem:[%s233 + $0x60] sm:$0xff] %v776
        %799 = vst [vmem:[%s233 + $0x68] sm:$0xff] %v778
        %800 = vst [vmem:[%s233 + $0x70] sm:$0xff] %v782
        %801 = vst [vmem:[%s233 + $0x78] sm:$0xff] %v784
        %s802 = sand.u32 %s138, 1
        %s803 = scalar_lea.sflag [#allocation4], %s802
        %s804 = sand.u32 %s138, 1
        %s805 = smul.addr %s804, 128
        %s806 = scalar_lea.vmem [#allocation5], %s805
        // Predicated region
        $region45: #{tpu_custom_call.1} parent=39 // pred_check
          %p807 = pneg %p148
        $region46: #{tpu_custom_call.1} parent=39 // pred_check_branch
          %809 = sbr.rel (%p807) target = $region48
        $region47: #{tpu_custom_call.1} parent=39 // pred_region
          %s810 = smul.u32 8, %s20
          %s812 = ssub.s32 2048, 2048
          %813 = vsyncadd %s803, %s812
          %s814 = smul.addr %s810, 2
          %s815 = smul.addr %s814, 128
          %s816 = scalar_lea.hbm %s5, %s815
          %s817 = sshll.u32 %s806, 4
          %s818 = int_to_ptr.vmem [resolvable:$true] %s817
          %823 = dma.vmem_to_hbm [thread:$0]  %s818, 2048, %s816, %s803, 256, 256, 16
        $region48: #{tpu_custom_call.1} parent=39 // pred_fallthru
          _
      $region40: #{tpu_custom_call.1} parent=5 // pred_fallthru
        _
      %p824 = scmp.le.s32.totalorder 2, %s15
      // Predicated region
      $region49: #{tpu_custom_call.1} parent=5 // pred_check
        %p825 = pneg %p824
      $region50: #{tpu_custom_call.1} parent=5 // pred_check_branch
        %827 = sbr.rel (%p825) target = $region52
      $region51: #{tpu_custom_call.1} parent=5 // pred_region
        %s828 = ssub.s32 %s15, 2
        // Predicated region
        $region53: #{tpu_custom_call.1} parent=51 // pred_check
          %p829 = pneg %p154
        $region54: #{tpu_custom_call.1} parent=51 // pred_check_branch
          %831 = sbr.rel (%p829) target = $region56
        $region55: #{tpu_custom_call.1} parent=51 // pred_region
          %s832 = sand.u32 %s139, 1
          %s833 = scalar_lea.sflag [#allocation4], %s832
          %s834 = sand.u32 %s139, 1
          %s835 = smul.addr %s834, 128
          %s836 = scalar_lea.vmem [#allocation5], %s835
          %837 = dma.done %s833, 2048
        $region56: #{tpu_custom_call.1} parent=51 // pred_fallthru
          _
      $region52: #{tpu_custom_call.1} parent=5 // pred_fallthru
        _
    $region6: #{tpu_custom_call.1} parent=1 // loop_footer
      %s19 = sadd.s32 1, %s15
    $region7: #{tpu_custom_call.1} parent=1 // loop_footer_branch
      %14 = sbr.rel target = $region3
    $region8: #{tpu_custom_call.1} parent=1 // loop_exit
      _
    %838 = vsyncpa [#allocation3], 1
    %s839 = scalar_lea.sflag [#allocation3], 1
    %840 = vsyncpa %s839, 1
    %841 = vsyncpa [#allocation4], 1
    %s842 = scalar_lea.sflag [#allocation4], 1
    %843 = vsyncpa %s842, 1

</llo_original>
